<compile_context>
chip_gen: v5e
topology: v5e:2x2
jax: 0.10.0
libtpu: 0.0.40
codegen_flags: <defaults>
</compile_context>

<pallas_src>
import jax
import jax.numpy as jnp
from jax.experimental import pallas as pl
from jax.experimental.pallas import tpu as pltpu


def ffn_kernel(x_ref, w1_ref, b1_ref, w2_ref, b2_ref, o_ref, acc_ref):
    # x_ref:  [TN, d_model]   w1_ref: [d_model, TFF]   b1_ref: [1, TFF]
    # w2_ref: [TFF, d_model]  b2_ref: [1, d_model]
    # o_ref:  [TN, d_model]   acc_ref: [TN, d_model] f32 scratch (persists over k)
    k = pl.program_id(1)

    @pl.when(k == 0)
    def _init():
        acc_ref[...] = jnp.zeros_like(acc_ref)

    # First linear (one d_ff panel) + bias + ReLU; f32 accumulation on the MXU.
    h = jnp.dot(x_ref[...], w1_ref[...], preferred_element_type=jnp.float32)
    h = jnp.maximum(h + b1_ref[...], 0.0)
    # (dropout == identity at inference)

    # Second linear: accumulate this panel's contribution into the f32 accumulator.
    acc_ref[...] += jnp.dot(h.astype(w2_ref.dtype), w2_ref[...],
                            preferred_element_type=jnp.float32)

    @pl.when(k == pl.num_programs(1) - 1)
    def _finalize():
        o_ref[...] = (acc_ref[...] + b2_ref[...]).astype(o_ref.dtype)


def _pick_tile(total, target, align):
    """Largest tile <= target that is a multiple of `align` and divides `total`;
    falls back to the full extent (always legal for a BlockSpec)."""
    t = min(target, total)
    t -= t % align
    while t >= align:
        if total % t == 0:
            return t
        t -= align
    return total


def _vmem_estimate(tn, tff, d_model, in_itemsize, w_itemsize):
    """Rough per-call VMEM footprint: double-buffered pipeline tiles + f32 acc."""
    x_t = tn * d_model * in_itemsize
    w1_t = d_model * tff * w_itemsize
    b1_t = tff * w_itemsize
    w2_t = tff * d_model * w_itemsize
    b2_t = d_model * w_itemsize
    o_t = tn * d_model * in_itemsize
    acc = tn * d_model * 4
    return 2 * (x_t + w1_t + b1_t + w2_t + b2_t + o_t) + acc


def positionwise_ffn(x, w1, b1, w2, b2, *, tile_n=512, tile_ff=1024,
                     vmem_budget_bytes=40 * 1024 * 1024):
    """x: [batch, seq, d_model]; w1: [d_model, d_ff]; b1: [d_ff];
       w2: [d_ff, d_model]; b2: [d_model].  Inference-mode FFN."""
    batch, seq, d_model = x.shape
    d_ff = w1.shape[1]
    n = batch * seq

    in_isz = jnp.dtype(x.dtype).itemsize
    w_isz = jnp.dtype(w1.dtype).itemsize

    # Biggest tiles that (a) divide the problem, (b) stay (8,128)-aligned,
    # (c) keep the double-buffered working set inside the VMEM budget.
    tn = _pick_tile(n, tile_n, 8)          # token tile (sublane-aligned)
    tff = _pick_tile(d_ff, tile_ff, 128)   # d_ff reduction panel (lane-aligned)
    while (_vmem_estimate(tn, tff, d_model, in_isz, w_isz) > vmem_budget_bytes
           and (tff > 128 or tn > 8)):
        if tff >= tn and tff > 128:
            tff = _pick_tile(d_ff, max(tff // 2, 128), 128)
        elif tn > 8:
            tn = _pick_tile(n, max(tn // 2, 8), 8)
        else:
            break

    x2d = x.reshape(n, d_model)
    b1_2d = b1.reshape(1, d_ff)
    b2_2d = b2.reshape(1, d_model)

    grid = (n // tn, d_ff // tff)

    def _bytes(a):
        return a.size * a.dtype.itemsize

    cost = pl.CostEstimate(
        flops=4 * n * d_model * d_ff,            # two matmuls, 2*N*dm*dff each
        transcendentals=0,
        bytes_accessed=(_bytes(x2d) + _bytes(w1) + _bytes(b1_2d)
                        + _bytes(w2) + _bytes(b2_2d)
                        + n * d_model * x.dtype.itemsize),
    )

    out2d = pl.pallas_call(
        ffn_kernel,
        out_shape=jax.ShapeDtypeStruct((n, d_model), x.dtype),
        grid_spec=pltpu.PrefetchScalarGridSpec(
            num_scalar_prefetch=0,
            grid=grid,
            in_specs=[
                pl.BlockSpec((tn, d_model), lambda i, k: (i, 0)),    # x tile (resident over k)
                pl.BlockSpec((d_model, tff), lambda i, k: (0, k)),   # w1 panel
                pl.BlockSpec((1, tff), lambda i, k: (0, k)),         # b1 panel
                pl.BlockSpec((tff, d_model), lambda i, k: (k, 0)),   # w2 panel
                pl.BlockSpec((1, d_model), lambda i, k: (0, 0)),     # b2 (resident)
            ],
            out_specs=pl.BlockSpec((tn, d_model), lambda i, k: (i, 0)),
            scratch_shapes=[pltpu.VMEM((tn, d_model), jnp.float32)],
        ),
        compiler_params=pltpu.CompilerParams(
            dimension_semantics=("parallel", "arbitrary"),
            vmem_limit_bytes=48 * 1024 * 1024,   # fits 64 MiB v7x and 128 MiB v5e/v6e
        ),
        cost_estimate=cost,
    )(x2d, w1, b1_2d, w2, b2_2d)

    return out2d.reshape(batch, seq, d_model)


if __name__ == "__main__":
    # Small but lane-aligned shapes: batch=2, seq=8, d_model=128, d_ff=512.
    batch, seq, d_model, d_ff = 2, 8, 128, 512

    key = jax.random.PRNGKey(0)
    kx, kw1, kb1, kw2, kb2 = jax.random.split(key, 5)

    x = jax.random.normal(kx, (batch, seq, d_model), dtype=jnp.float32)

    # Deterministic init mimicking nn.Linear's uniform(-1/sqrt(fan_in), +1/sqrt(fan_in)).
    lim1 = 1.0 / (d_model ** 0.5)
    lim2 = 1.0 / (d_ff ** 0.5)
    w1 = jax.random.uniform(kw1, (d_model, d_ff), jnp.float32, -lim1, lim1)
    b1 = jax.random.uniform(kb1, (d_ff,), jnp.float32, -lim1, lim1)
    w2 = jax.random.uniform(kw2, (d_ff, d_model), jnp.float32, -lim2, lim2)
    b2 = jax.random.uniform(kb2, (d_model,), jnp.float32, -lim2, lim2)

    # Small tiles here so the test exercises both grid axes: grid = (2, 2).
    out = positionwise_ffn(x, w1, b1, w2, b2, tile_n=8, tile_ff=256)
    jax.block_until_ready(out)

    # Reference in plain JAX.
    ref = jnp.maximum(x @ w1 + b1, 0.0) @ w2 + b2
    assert out.shape == (batch, seq, d_model)
    assert jnp.allclose(out, ref, atol=1e-4, rtol=1e-4), \
        f"max abs err {jnp.max(jnp.abs(out - ref))}"

    print("KERNEL_OK")
</pallas_src>

<mosaic_0001>
module attributes {stable_mosaic.version = 11 : i64} {
  func.func @ffn_kernel(%arg0: i32, %arg1: i32, %arg2: memref<8x128xf32, #tpu.memory_space<vmem>>, %arg3: memref<128x256xf32, #tpu.memory_space<vmem>>, %arg4: memref<1x256xf32, #tpu.memory_space<vmem>>, %arg5: memref<256x128xf32, #tpu.memory_space<vmem>>, %arg6: memref<1x128xf32, #tpu.memory_space<vmem>>, %arg7: memref<8x128xf32, #tpu.memory_space<vmem>>, %arg8: memref<8x128xf32, #tpu.memory_space<vmem>>) attributes {dimension_semantics = [#tpu.dimension_semantics<parallel>, #tpu.dimension_semantics<arbitrary>], iteration_bounds = array<i64: 2, 2>, scalar_prefetch = 0 : i64, scratch_operands = 1 : i64, tpu.core_type = #tpu.core_type<tc>, window_params = [{transform_indices = @transform_0, window_bounds = array<i64: 8, 128>}, {transform_indices = @transform_1, window_bounds = array<i64: 128, 256>}, {transform_indices = @transform_2, window_bounds = array<i64: 1, 256>}, {transform_indices = @transform_3, window_bounds = array<i64: 256, 128>}, {pipeline_mode = #tpu.pipeline_mode<synchronous>, transform_indices = @transform_4, window_bounds = array<i64: 1, 128>}, {transform_indices = @transform_5, window_bounds = array<i64: 8, 128>}]} {
    %c0_i32 = arith.constant 0 : i32
    %0 = arith.cmpi eq, %arg1, %c0_i32 : i32
    %1 = arith.extui %0 : i1 to i32
    %c0_i32_0 = arith.constant 0 : i32
    %2 = arith.cmpi ne, %1, %c0_i32_0 : i32
    scf.if %2 {
      %cst_15 = arith.constant 0.000000e+00 : f32
      %19 = vector.broadcast %cst_15 : f32 to vector<8x128xf32>
      %c0_16 = arith.constant 0 : index
      %c0_17 = arith.constant 0 : index
      %20 = vector.load %arg8[%c0_16, %c0_17] : memref<8x128xf32, #tpu.memory_space<vmem>>, vector<8x128xf32>
      tpu.vector_store %arg8[%c0_16, %c0_17], %19 {strides = array<i32>} : memref<8x128xf32, #tpu.memory_space<vmem>>, vector<8x128xf32>,
    } else {
    }
    %c0 = arith.constant 0 : index
    %c0_1 = arith.constant 0 : index
    %3 = vector.load %arg2[%c0, %c0_1] : memref<8x128xf32, #tpu.memory_space<vmem>>, vector<8x128xf32>
    %c0_2 = arith.constant 0 : index
    %c0_3 = arith.constant 0 : index
    %4 = vector.load %arg3[%c0_2, %c0_3] : memref<128x256xf32, #tpu.memory_space<vmem>>, vector<128x256xf32>
    %cst = arith.constant dense<0.000000e+00> : vector<8x256xf32>
    %5 = tpu.matmul %3, %4, %cst {dimension_numbers = #tpu.dot_dimension_numbers<[1], [0], [0], [1], [0, 0, 1, 1], [], []>} : vector<8x128xf32>, vector<128x256xf32>, vector<8x256xf32> -> vector<8x256xf32>
    %c0_4 = arith.constant 0 : index
    %c0_5 = arith.constant 0 : index
    %6 = vector.load %arg4[%c0_4, %c0_5] : memref<1x256xf32, #tpu.memory_space<vmem>>, vector<1x256xf32>
    %7 = vector.broadcast %6 : vector<1x256xf32> to vector<8x256xf32>
    %8 = arith.addf %5, %7 : vector<8x256xf32>
    %cst_6 = arith.constant 0.000000e+00 : f32
    %9 = vector.broadcast %cst_6 : f32 to vector<8x256xf32>
    %10 = arith.maximumf %8, %9 : vector<8x256xf32>
    %c0_7 = arith.constant 0 : index
    %c0_8 = arith.constant 0 : index
    %11 = vector.load %arg8[%c0_7, %c0_8] : memref<8x128xf32, #tpu.memory_space<vmem>>, vector<8x128xf32>
    %c0_9 = arith.constant 0 : index
    %c0_10 = arith.constant 0 : index
    %12 = vector.load %arg5[%c0_9, %c0_10] : memref<256x128xf32, #tpu.memory_space<vmem>>, vector<256x128xf32>
    %cst_11 = arith.constant dense<0.000000e+00> : vector<8x128xf32>
    %13 = tpu.matmul %10, %12, %cst_11 {dimension_numbers = #tpu.dot_dimension_numbers<[1], [0], [0], [1], [0, 0, 1, 1], [], []>} : vector<8x256xf32>, vector<256x128xf32>, vector<8x128xf32> -> vector<8x128xf32>
    %14 = arith.addf %11, %13 : vector<8x128xf32>
    %c0_12 = arith.constant 0 : index
    %c0_13 = arith.constant 0 : index
    %15 = vector.load %arg8[%c0_12, %c0_13] : memref<8x128xf32, #tpu.memory_space<vmem>>, vector<8x128xf32>
    tpu.vector_store %arg8[%c0_12, %c0_13], %14 {strides = array<i32>} : memref<8x128xf32, #tpu.memory_space<vmem>>, vector<8x128xf32>,
    %c1_i32 = arith.constant 1 : i32
    %16 = arith.cmpi eq, %arg1, %c1_i32 : i32
    %17 = arith.extui %16 : i1 to i32
    %c0_i32_14 = arith.constant 0 : i32
    %18 = arith.cmpi ne, %17, %c0_i32_14 : i32
    scf.if %18 {
      %c0_15 = arith.constant 0 : index
      %c0_16 = arith.constant 0 : index
      %19 = vector.load %arg8[%c0_15, %c0_16] : memref<8x128xf32, #tpu.memory_space<vmem>>, vector<8x128xf32>
      %c0_17 = arith.constant 0 : index
      %c0_18 = arith.constant 0 : index
      %20 = vector.load %arg6[%c0_17, %c0_18] : memref<1x128xf32, #tpu.memory_space<vmem>>, vector<1x128xf32>
      %21 = vector.broadcast %20 : vector<1x128xf32> to vector<8x128xf32>
      %22 = arith.addf %19, %21 : vector<8x128xf32>
      %c0_19 = arith.constant 0 : index
      %c0_20 = arith.constant 0 : index
      %23 = vector.load %arg7[%c0_19, %c0_20] : memref<8x128xf32, #tpu.memory_space<vmem>>, vector<8x128xf32>
      tpu.vector_store %arg7[%c0_19, %c0_20], %22 {strides = array<i32>} : memref<8x128xf32, #tpu.memory_space<vmem>>, vector<8x128xf32>,
    } else {
    }
    return
  }
  func.func @transform_0(%arg0: i32, %arg1: i32) -> (i32, i32) {
    %c0_i32 = arith.constant 0 : i32
    %c0_i32_0 = arith.constant 0 : i32
    return %arg0, %c0_i32 : i32, i32
  }
  func.func @transform_1(%arg0: i32, %arg1: i32) -> (i32, i32) {
    %c0_i32 = arith.constant 0 : i32
    %c0_i32_0 = arith.constant 0 : i32
    return %c0_i32, %arg1 : i32, i32
  }
  func.func @transform_2(%arg0: i32, %arg1: i32) -> (i32, i32) {
    %c0_i32 = arith.constant 0 : i32
    %c0_i32_0 = arith.constant 0 : i32
    return %c0_i32, %arg1 : i32, i32
  }
  func.func @transform_3(%arg0: i32, %arg1: i32) -> (i32, i32) {
    %c0_i32 = arith.constant 0 : i32
    %c0_i32_0 = arith.constant 0 : i32
    return %arg1, %c0_i32 : i32, i32
  }
  func.func @transform_4(%arg0: i32, %arg1: i32) -> (i32, i32) {
    %c0_i32 = arith.constant 0 : i32
    %c0_i32_0 = arith.constant 0 : i32
    %c0_i32_1 = arith.constant 0 : i32
    return %c0_i32, %c0_i32_0 : i32, i32
  }
  func.func @transform_5(%arg0: i32, %arg1: i32) -> (i32, i32) {
    %c0_i32 = arith.constant 0 : i32
    %c0_i32_0 = arith.constant 0 : i32
    return %arg0, %c0_i32 : i32, i32
  }
}

</mosaic_0001>

<llo_original>
// kernel: tpu_custom_call.1
$region0: #{tpu_custom_call.1}
  #allocation0 [shape = 'u32[]', space=smem, size = 0x4, offset = 0x4, fixed_abs, tag = 'smem constant byte address 0x4 - core index']
  #allocation1 [shape = 'u32[72,128]{1,0:T(1,128)}', space=vmem, size = 0x9000, scoped, tag = 'internal scratch']
  #allocation2 [shape = 'f32[8,128]{1,0:T(8,128)}', space=vmem, size = 0x1000, scoped, tag = 'scratch operand']
  %s0 = inlined_call_operand.hbm [shape: f32[16,128], index: 0, kind: input, shape index: {}]
  %s1 = inlined_call_operand.hbm [shape: f32[128,512], index: 1, kind: input, shape index: {}]
  %s2 = inlined_call_operand.hbm [shape: f32[1,512], index: 2, kind: input, shape index: {}]
  %s3 = inlined_call_operand.hbm [shape: f32[512,128], index: 3, kind: input, shape index: {}]
  %s4 = inlined_call_operand.vmem [shape: f32[1,128], index: 4, kind: input, shape index: {}]
  %s5 = inlined_call_operand.hbm [shape: f32[16,128], index: 5, kind: output, shape index: {}]
  %s6 = sld [smem:[#allocation0]]
  $region77: #{tpu_custom_call.1} parent=0
    _
  %s8 = ssub.s32 1, %s6
  %s9 = scalar_select 0, %s8, %s6
  $region1: #{tpu_custom_call.1} parent=0
    #allocation3 [shape = 'u8[8192]{0}', space=vmem, size = 0x2000, scoped, tag = 'input window, operand 0']
    #allocation4 [shape = 's32[2]{0}', space=sflag, size = 0x8, scoped, tag = 'scoped memory for tpu_custom_call.1']
    #allocation5 [shape = 's32[2]{0}', space=sflag, size = 0x8, scoped, tag = 'scoped memory for tpu_custom_call.1']
    #allocation6 [shape = 'u8[262144]{0}', space=vmem, size = 0x40000, scoped, tag = 'input window, operand 1']
    #allocation7 [shape = 's32[2]{0}', space=sflag, size = 0x8, scoped, tag = 'scoped memory for tpu_custom_call.1']
    #allocation8 [shape = 'u8[2048]{0}', space=vmem, size = 0x800, scoped, tag = 'input window, operand 2']
    #allocation9 [shape = 'u8[262144]{0}', space=vmem, size = 0x40000, scoped, tag = 'input window, operand 3']
    #allocation10 [shape = 's32[2]{0}', space=sflag, size = 0x8, scoped, tag = 'scoped memory for tpu_custom_call.1']
    #allocation11 [shape = 'u8[8192]{0}', space=vmem, size = 0x2000, scoped, tag = 'output window, operand 0']
    %10 = vsyncpa [#allocation4], 0
    %s11 = scalar_lea.sflag [#allocation4], 1
    %12 = vsyncpa %s11, 0
    %13 = vsyncpa [#allocation7], 0
    %s14 = scalar_lea.sflag [#allocation7], 1
    %15 = vsyncpa %s14, 0
    %16 = vsyncpa [#allocation10], 0
    %s17 = scalar_lea.sflag [#allocation10], 1
    %18 = vsyncpa %s17, 0
    %19 = vsyncpa [#allocation5], 0
    %s20 = scalar_lea.sflag [#allocation5], 1
    %21 = vsyncpa %s20, 0
    loop: start=0, step=1, limit=6
    $region2: #{tpu_custom_call.1} parent=1 // loop_pre_header
      _
    $region3: #{tpu_custom_call.1} parent=1 // loop_header
      %s23 = sphi 0, %s27
      %p24 = scmp.ge.s32.totalorder %s23, 6
      %s30 = sphi 0, %s42
      %s31 = sphi 0, %s38
      %s32 = sphi 0, %s30
      %s33 = sphi 0, %s31
      %s34 = sphi 0, %s32
      %s35 = sphi 0, %s33
      %s45 = sphi 0, %s47
      %s48 = sphi 0, %s45
      %s49 = sphi 0, %s48
      %s65 = sphi 0, %s49
      %s71 = sphi 0, %s73
      %s74 = sphi 0, %s71
      %s75 = sphi 0, %s74
      %s91 = sphi 0, %s75
      %s97 = sphi 0, %s99
      %s100 = sphi 0, %s97
      %s101 = sphi 0, %s100
      %s117 = sphi 0, %s101
      %s123 = sphi 0, %s125
      %s126 = sphi 0, %s123
      %s127 = sphi 0, %s126
      %s143 = sphi 0, %s127
      %s147 = sphi 0, %s147
      %s149 = sphi 0, %s147
      %s150 = sphi 0, %s149
      %s164 = sphi 0, %s150
      %s170 = sphi 0, %s172
      %s173 = sphi 0, %s170
      %s174 = sphi 0, %s173
      %s190 = sphi 0, %s174
    $region4: #{tpu_custom_call.1} parent=1 // loop_header_branch
      %26 = sbr.rel (%p24) target = $region8
    $region5: #{tpu_custom_call.1} parent=1 // loop_body
      %s28 = ssub.s32 %s23, 1
      %s29 = ssub.s32 %s23, 2
      %s36 = sadd.s32 1, %s31
      %p37 = scmp.ge.s32.totalorder %s36, 2
      %s38 = scalar_select %p37, 0, %s36
      %s39 = sadd.s32 1, %s30
      %s40 = scalar_select %p37, %s39, %s30
      %p41 = scmp.ge.s32.totalorder %s40, 2
      %s42 = scalar_select %p41, 0, %s40
      %s43 = ssub.s32 %s30, %s42
      %p44 = scmp.eq.s32.totalorder %s43, 0
      %s46 = sadd.s32 %s45, 1
      %s47 = scalar_select %p44, %s45, %s46
      %p50 = pneg %p44
      %p51 = scmp.eq.s32.totalorder %s23, 3
      %p52 = por %p50, %p51
      %p53 = scmp.ne.s32.totalorder %s45, %s48
      %p54 = scmp.eq.s32.totalorder %s23, 0
      %p55 = por %p53, %p54
      %p56 = scmp.ne.s32.totalorder %s45, %s48
      %p57 = scmp.eq.s32.totalorder %s28, 3
      %p58 = por %p56, %p57
      %p59 = scmp.ne.s32.totalorder %s48, %s49
      %p60 = scmp.eq.s32.totalorder %s28, 0
      %p61 = por %p59, %p60
      %p62 = scmp.ne.s32.totalorder %s48, %s49
      %p63 = scmp.eq.s32.totalorder %s29, 3
      %p64 = por %p62, %p63
      %p66 = scmp.ne.s32.totalorder %s49, %s65
      %p67 = scmp.eq.s32.totalorder %s29, 0
      %p68 = por %p66, %p67
      %s69 = ssub.s32 %s31, %s38
      %p70 = scmp.eq.s32.totalorder %s69, 0
      %s72 = sadd.s32 %s71, 1
      %s73 = scalar_select %p70, %s71, %s72
      %p76 = pneg %p70
      %p77 = scmp.eq.s32.totalorder %s23, 3
      %p78 = por %p76, %p77
      %p79 = scmp.ne.s32.totalorder %s71, %s74
      %p80 = scmp.eq.s32.totalorder %s23, 0
      %p81 = por %p79, %p80
      %p82 = scmp.ne.s32.totalorder %s71, %s74
      %p83 = scmp.eq.s32.totalorder %s28, 3
      %p84 = por %p82, %p83
      %p85 = scmp.ne.s32.totalorder %s74, %s75
      %p86 = scmp.eq.s32.totalorder %s28, 0
      %p87 = por %p85, %p86
      %p88 = scmp.ne.s32.totalorder %s74, %s75
      %p89 = scmp.eq.s32.totalorder %s29, 3
      %p90 = por %p88, %p89
      %p92 = scmp.ne.s32.totalorder %s75, %s91
      %p93 = scmp.eq.s32.totalorder %s29, 0
      %p94 = por %p92, %p93
      %s95 = ssub.s32 %s31, %s38
      %p96 = scmp.eq.s32.totalorder %s95, 0
      %s98 = sadd.s32 %s97, 1
      %s99 = scalar_select %p96, %s97, %s98
      %p102 = pneg %p96
      %p103 = scmp.eq.s32.totalorder %s23, 3
      %p104 = por %p102, %p103
      %p105 = scmp.ne.s32.totalorder %s97, %s100
      %p106 = scmp.eq.s32.totalorder %s23, 0
      %p107 = por %p105, %p106
      %p108 = scmp.ne.s32.totalorder %s97, %s100
      %p109 = scmp.eq.s32.totalorder %s28, 3
      %p110 = por %p108, %p109
      %p111 = scmp.ne.s32.totalorder %s100, %s101
      %p112 = scmp.eq.s32.totalorder %s28, 0
      %p113 = por %p111, %p112
      %p114 = scmp.ne.s32.totalorder %s100, %s101
      %p115 = scmp.eq.s32.totalorder %s29, 3
      %p116 = por %p114, %p115
      %p118 = scmp.ne.s32.totalorder %s101, %s117
      %p119 = scmp.eq.s32.totalorder %s29, 0
      %p120 = por %p118, %p119
      %s121 = ssub.s32 %s31, %s38
      %p122 = scmp.eq.s32.totalorder %s121, 0
      %s124 = sadd.s32 %s123, 1
      %s125 = scalar_select %p122, %s123, %s124
      %p128 = pneg %p122
      %p129 = scmp.eq.s32.totalorder %s23, 3
      %p130 = por %p128, %p129
      %p131 = scmp.ne.s32.totalorder %s123, %s126
      %p132 = scmp.eq.s32.totalorder %s23, 0
      %p133 = por %p131, %p132
      %p134 = scmp.ne.s32.totalorder %s123, %s126
      %p135 = scmp.eq.s32.totalorder %s28, 3
      %p136 = por %p134, %p135
      %p137 = scmp.ne.s32.totalorder %s126, %s127
      %p138 = scmp.eq.s32.totalorder %s28, 0
      %p139 = por %p137, %p138
      %p140 = scmp.ne.s32.totalorder %s126, %s127
      %p141 = scmp.eq.s32.totalorder %s29, 3
      %p142 = por %p140, %p141
      %p144 = scmp.ne.s32.totalorder %s127, %s143
      %p145 = scmp.eq.s32.totalorder %s29, 0
      %p146 = por %p144, %p145
      %s148 = sadd.s32 %s147, 1
      %p151 = scmp.eq.s32.totalorder %s23, 3
      %p152 = scmp.ne.s32.totalorder %s147, %s149
      %p153 = scmp.eq.s32.totalorder %s23, 0
      %p154 = por %p152, %p153
      %p155 = scmp.ne.s32.totalorder %s147, %s149
      %p156 = scmp.eq.s32.totalorder %s28, 3
      %p157 = por %p155, %p156
      %p158 = scmp.ne.s32.totalorder %s149, %s150
      %p159 = scmp.eq.s32.totalorder %s28, 0
      %p160 = por %p158, %p159
      %p161 = scmp.ne.s32.totalorder %s149, %s150
      %p162 = scmp.eq.s32.totalorder %s29, 3
      %p163 = por %p161, %p162
      %p165 = scmp.ne.s32.totalorder %s150, %s164
      %p166 = scmp.eq.s32.totalorder %s29, 0
      %p167 = por %p165, %p166
      %s168 = ssub.s32 %s30, %s42
      %p169 = scmp.eq.s32.totalorder %s168, 0
      %s171 = sadd.s32 %s170, 1
      %s172 = scalar_select %p169, %s170, %s171
      %p175 = pneg %p169
      %p176 = scmp.eq.s32.totalorder %s23, 3
      %p177 = por %p175, %p176
      %p178 = scmp.ne.s32.totalorder %s170, %s173
      %p179 = scmp.eq.s32.totalorder %s23, 0
      %p180 = por %p178, %p179
      %p181 = scmp.ne.s32.totalorder %s170, %s173
      %p182 = scmp.eq.s32.totalorder %s28, 3
      %p183 = por %p181, %p182
      %p184 = scmp.ne.s32.totalorder %s173, %s174
      %p185 = scmp.eq.s32.totalorder %s28, 0
      %p186 = por %p184, %p185
      %p187 = scmp.ne.s32.totalorder %s173, %s174
      %p188 = scmp.eq.s32.totalorder %s29, 3
      %p189 = por %p187, %p188
      %p191 = scmp.ne.s32.totalorder %s174, %s190
      %p192 = scmp.eq.s32.totalorder %s29, 0
      %p193 = por %p191, %p192
      %p194 = scmp.le.s32.totalorder 1, %s23
      %p195 = scmp.lt.s32.totalorder %s23, 5
      %p196 = pnand %p194, %p195
      %p197 = pneg %p196
      // Predicated region
      $region9: #{tpu_custom_call.1} parent=5 // pred_check
        _
      $region10: #{tpu_custom_call.1} parent=5 // pred_check_branch
        %199 = sbr.rel (%p196) target = $region12
      $region11: #{tpu_custom_call.1} parent=5 // pred_region
        %s200 = ssub.s32 %s23, 1
        // Predicated region
        $region13: #{tpu_custom_call.1} parent=11 // pred_check
          %p201 = pneg %p160
        $region14: #{tpu_custom_call.1} parent=11 // pred_check_branch
          %203 = sbr.rel (%p201) target = $region16
        $region15: #{tpu_custom_call.1} parent=11 // pred_region
          _
        $region16: #{tpu_custom_call.1} parent=11 // pred_fallthru
          _
      $region12: #{tpu_custom_call.1} parent=5 // pred_fallthru
        _
      %p204 = scmp.lt.s32.totalorder %s23, 4
      // Predicated region
      $region17: #{tpu_custom_call.1} parent=5 // pred_check
        %p205 = pneg %p204
      $region18: #{tpu_custom_call.1} parent=5 // pred_check_branch
        %207 = sbr.rel (%p205) target = $region20
      $region19: #{tpu_custom_call.1} parent=5 // pred_region
        // Predicated region
        $region21: #{tpu_custom_call.1} parent=19 // pred_check
          %p208 = pneg %p55
        $region22: #{tpu_custom_call.1} parent=19 // pred_check_branch
          %210 = sbr.rel (%p208) target = $region24
        $region23: #{tpu_custom_call.1} parent=19 // pred_region
          %s211 = sand.u32 %s45, 1
          %s212 = scalar_lea.sflag [#allocation4], %s211
          %s213 = sand.u32 %s45, 1
          %s214 = smul.addr %s213, 8
          %s215 = scalar_lea.vmem [#allocation3], %s214
          %217 = vsyncadd %s212, 0
          %s218 = smul.addr %s30, 8
          %s219 = scalar_lea.hbm %s0, %s218
          %s221 = sshll.u32 %s219, 4
          %s222 = int_to_ptr.hbm [resolvable:$true] %s221
          %s223 = sshll.u32 %s215, 4
          %s224 = int_to_ptr.vmem [resolvable:$true] %s223
          %226 = dma.hbm_to_vmem [thread:$0]  %s222, 128, %s224, %s212
        $region24: #{tpu_custom_call.1} parent=19 // pred_fallthru
          _
        // Predicated region
        $region25: #{tpu_custom_call.1} parent=19 // pred_check
          %p227 = pneg %p81
        $region26: #{tpu_custom_call.1} parent=19 // pred_check_branch
          %229 = sbr.rel (%p227) target = $region28
        $region27: #{tpu_custom_call.1} parent=19 // pred_region
          %s230 = sand.u32 %s23, 1
          %s231 = scalar_lea.sflag [#allocation7], %s230
          %s232 = sand.u32 %s71, 1
          %s233 = smul.addr %s232, 256
          %s234 = scalar_lea.vmem [#allocation6], %s233
          %s235 = smul.u32 2, %s31
          %237 = vsyncadd %s231, 0
          %s238 = smul.addr %s235, 8
          %s239 = scalar_lea.hbm %s1, %s238
          %s240 = sshll.u32 %s239, 4
          %s241 = int_to_ptr.hbm [resolvable:$true] %s240
          %s242 = sshll.u32 %s234, 4
          %s243 = int_to_ptr.vmem [resolvable:$true] %s242
          %248 = dma.hbm_to_vmem [thread:$0]  %s241, 4096, %s243, %s231, 512, 256, 16
        $region28: #{tpu_custom_call.1} parent=19 // pred_fallthru
          _
        // Predicated region
        $region29: #{tpu_custom_call.1} parent=19 // pred_check
          %p249 = pneg %p107
        $region30: #{tpu_custom_call.1} parent=19 // pred_check_branch
          %251 = sbr.rel (%p249) target = $region32
        $region31: #{tpu_custom_call.1} parent=19 // pred_region
          %s252 = sand.u32 %s23, 1
          %s253 = scalar_lea.sflag [#allocation7], %s252
          %s254 = sand.u32 %s97, 1
          %s255 = smul.addr %s254, 2
          %s256 = scalar_lea.vmem [#allocation8], %s255
          %s257 = smul.u32 2, %s31
          %259 = vsyncadd %s253, 0
          %s260 = scalar_lea.hbm %s2, %s257
          %s262 = sshll.u32 %s260, 4
          %s263 = int_to_ptr.hbm [resolvable:$true] %s262
          %s264 = sshll.u32 %s256, 4
          %s265 = int_to_ptr.vmem [resolvable:$true] %s264
          %267 = dma.hbm_to_vmem [thread:$0]  %s263, 32, %s265, %s253
        $region32: #{tpu_custom_call.1} parent=19 // pred_fallthru
          _
        // Predicated region
        $region33: #{tpu_custom_call.1} parent=19 // pred_check
          %p268 = pneg %p133
        $region34: #{tpu_custom_call.1} parent=19 // pred_check_branch
          %270 = sbr.rel (%p268) target = $region36
        $region35: #{tpu_custom_call.1} parent=19 // pred_region
          %s271 = sand.u32 %s123, 1
          %s272 = scalar_lea.sflag [#allocation10], %s271
          %s273 = sand.u32 %s123, 1
          %s274 = smul.addr %s273, 256
          %s275 = scalar_lea.vmem [#allocation9], %s274
          %s276 = smul.u32 32, %s31
          %278 = vsyncadd %s272, 0
          %s279 = smul.addr %s276, 8
          %s280 = scalar_lea.hbm %s3, %s279
          %s281 = sshll.u32 %s280, 4
          %s282 = int_to_ptr.hbm [resolvable:$true] %s281
          %s283 = sshll.u32 %s275, 4
          %s284 = int_to_ptr.vmem [resolvable:$true] %s283
          %289 = dma.hbm_to_vmem [thread:$0]  %s282, 4096, %s284, %s272, 128, 128, 8
        $region36: #{tpu_custom_call.1} parent=19 // pred_fallthru
          _
      $region20: #{tpu_custom_call.1} parent=5 // pred_fallthru
        _
      %p290 = scmp.le.s32.totalorder 1, %s23
      %p291 = scmp.lt.s32.totalorder %s23, 5
      %p292 = pnand %p290, %p291
      %p293 = pneg %p292
      // Predicated region
      $region37: #{tpu_custom_call.1} parent=5 // pred_check
        _
      $region38: #{tpu_custom_call.1} parent=5 // pred_check_branch
        %295 = sbr.rel (%p292) target = $region40
      $region39: #{tpu_custom_call.1} parent=5 // pred_region
        %s296 = ssub.s32 %s23, 1
        %s297 = sand.u32 %s48, 1
        %s298 = scalar_lea.sflag [#allocation4], %s297
        %s299 = sand.u32 %s48, 1
        %s300 = smul.addr %s299, 8
        %s301 = scalar_lea.vmem [#allocation3], %s300
        // Predicated region
        $region41: #{tpu_custom_call.1} parent=39 // pred_check
          %p302 = pneg %p61
        $region42: #{tpu_custom_call.1} parent=39 // pred_check_branch
          %304 = sbr.rel (%p302) target = $region44
        $region43: #{tpu_custom_call.1} parent=39 // pred_region
          %306 = dma.done %s298, 128
        $region44: #{tpu_custom_call.1} parent=39 // pred_fallthru
          _
        %s307 = sand.u32 %s28, 1
        %s308 = scalar_lea.sflag [#allocation7], %s307
        %s309 = sand.u32 %s74, 1
        %s310 = smul.addr %s309, 256
        %s311 = scalar_lea.vmem [#allocation6], %s310
        // Predicated region
        $region45: #{tpu_custom_call.1} parent=39 // pred_check
          %p312 = pneg %p87
        $region46: #{tpu_custom_call.1} parent=39 // pred_check_branch
          %314 = sbr.rel (%p312) target = $region48
        $region47: #{tpu_custom_call.1} parent=39 // pred_region
          %316 = dma.done %s308, 4096
        $region48: #{tpu_custom_call.1} parent=39 // pred_fallthru
          _
        %s317 = sand.u32 %s28, 1
        %s318 = scalar_lea.sflag [#allocation7], %s317
        %s319 = sand.u32 %s100, 1
        %s320 = smul.addr %s319, 2
        %s321 = scalar_lea.vmem [#allocation8], %s320
        // Predicated region
        $region49: #{tpu_custom_call.1} parent=39 // pred_check
          %p322 = pneg %p113
        $region50: #{tpu_custom_call.1} parent=39 // pred_check_branch
          %324 = sbr.rel (%p322) target = $region52
        $region51: #{tpu_custom_call.1} parent=39 // pred_region
          %326 = dma.done %s318, 32
        $region52: #{tpu_custom_call.1} parent=39 // pred_fallthru
          _
        %s327 = sand.u32 %s126, 1
        %s328 = scalar_lea.sflag [#allocation10], %s327
        %s329 = sand.u32 %s126, 1
        %s330 = smul.addr %s329, 256
        %s331 = scalar_lea.vmem [#allocation9], %s330
        // Predicated region
        $region53: #{tpu_custom_call.1} parent=39 // pred_check
          %p332 = pneg %p139
        $region54: #{tpu_custom_call.1} parent=39 // pred_check_branch
          %334 = sbr.rel (%p332) target = $region56
        $region55: #{tpu_custom_call.1} parent=39 // pred_region
          %336 = dma.done %s328, 4096
        $region56: #{tpu_custom_call.1} parent=39 // pred_fallthru
          _
        %s337 = sand.u32 %s48, 1
        %s338 = scalar_lea.sflag [#allocation4], %s337
        %s339 = sand.u32 %s48, 1
        %s340 = smul.addr %s339, 8
        %s341 = scalar_lea.vmem [#allocation3], %s340
        %p342 = pneg %p61
        %p343 = pneg %p58
        %s344 = sand.u32 %s28, 1
        %s345 = scalar_lea.sflag [#allocation7], %s344
        %s346 = sand.u32 %s74, 1
        %s347 = smul.addr %s346, 256
        %s348 = scalar_lea.vmem [#allocation6], %s347
        %p349 = pneg %p87
        %p350 = pneg %p84
        %s351 = sand.u32 %s28, 1
        %s352 = scalar_lea.sflag [#allocation7], %s351
        %s353 = sand.u32 %s100, 1
        %s354 = smul.addr %s353, 2
        %s355 = scalar_lea.vmem [#allocation8], %s354
        %p356 = pneg %p113
        %p357 = pneg %p110
        %s358 = sand.u32 %s126, 1
        %s359 = scalar_lea.sflag [#allocation10], %s358
        %s360 = sand.u32 %s126, 1
        %s361 = smul.addr %s360, 256
        %s362 = scalar_lea.vmem [#allocation9], %s361
        %p363 = pneg %p139
        %p364 = pneg %p136
        %p365 = pneg %p160
        %p366 = pneg %p157
        %p367 = pneg %p186
        %p368 = pneg %p183
        %s369 = sand.u32 %s173, 1
        %s370 = scalar_lea.sflag [#allocation5], %s369
        %s371 = sand.u32 %s173, 1
        %s372 = smul.addr %s371, 8
        %s373 = scalar_lea.vmem [#allocation11], %s372
        %s374 = smul.u32 2, %s33
        %s375 = smul.u32 2, %s33
        %s376 = smul.u32 32, %s33
        %p377 = scmp.eq.s32.totalorder %s33, 0
        // Predicated region
        $region57: #{tpu_custom_call.1} parent=39 // pred_check
          %p378 = pneg %p377
        $region58: #{tpu_custom_call.1} parent=39 // pred_check_branch
          %380 = sbr.rel (%p378) target = $region60
        $region59: #{tpu_custom_call.1} parent=39 // pred_region
          %381 = vst [vmem:[#allocation2] sm:$0xff] 0.0
        $region60: #{tpu_custom_call.1} parent=39 // pred_fallthru
          _
        %v382 = vld [vmem:[%s301] sm:$0xff]
        %v383 = vld [vmem:[%s311] sm:$0xff]
        %v384 = vld [vmem:[%s311 + $0x8] sm:$0xff]
        %v385 = vld [vmem:[%s311 + $0x10] sm:$0xff]
        %v386 = vld [vmem:[%s311 + $0x18] sm:$0xff]
        %v387 = vld [vmem:[%s311 + $0x20] sm:$0xff]
        %v388 = vld [vmem:[%s311 + $0x28] sm:$0xff]
        %v389 = vld [vmem:[%s311 + $0x30] sm:$0xff]
        %v390 = vld [vmem:[%s311 + $0x38] sm:$0xff]
        %v391 = vld [vmem:[%s311 + $0x40] sm:$0xff]
        %v392 = vld [vmem:[%s311 + $0x48] sm:$0xff]
        %v393 = vld [vmem:[%s311 + $0x50] sm:$0xff]
        %v394 = vld [vmem:[%s311 + $0x58] sm:$0xff]
        %v395 = vld [vmem:[%s311 + $0x60] sm:$0xff]
        %v396 = vld [vmem:[%s311 + $0x68] sm:$0xff]
        %v397 = vld [vmem:[%s311 + $0x70] sm:$0xff]
        %v398 = vld [vmem:[%s311 + $0x78] sm:$0xff]
        %v399 = vld [vmem:[%s311 + $0x80] sm:$0xff]
        %v400 = vld [vmem:[%s311 + $0x88] sm:$0xff]
        %v401 = vld [vmem:[%s311 + $0x90] sm:$0xff]
        %v402 = vld [vmem:[%s311 + $0x98] sm:$0xff]
        %v403 = vld [vmem:[%s311 + $0xa0] sm:$0xff]
        %v404 = vld [vmem:[%s311 + $0xa8] sm:$0xff]
        %v405 = vld [vmem:[%s311 + $0xb0] sm:$0xff]
        %v406 = vld [vmem:[%s311 + $0xb8] sm:$0xff]
        %v407 = vld [vmem:[%s311 + $0xc0] sm:$0xff]
        %v408 = vld [vmem:[%s311 + $0xc8] sm:$0xff]
        %v409 = vld [vmem:[%s311 + $0xd0] sm:$0xff]
        %v410 = vld [vmem:[%s311 + $0xd8] sm:$0xff]
        %v411 = vld [vmem:[%s311 + $0xe0] sm:$0xff]
        %v412 = vld [vmem:[%s311 + $0xe8] sm:$0xff]
        %v413 = vld [vmem:[%s311 + $0xf0] sm:$0xff]
        %v414 = vld [vmem:[%s311 + $0xf8] sm:$0xff]
        %v415 = vld [vmem:[%s321] sm:$0x3]
        %v417 = vperm.slane %v415, 0
        %v418 = vperm.slane %v415, 1
        %421 = vmatpush.msra.mxu0 %v413
        %422 = vmatpush.msra.mxu0 %v411
        %423 = vmatpush.msra.mxu0 %v409
        %424 = vmatpush.msra.mxu0 %v407
        %425 = vmatpush.msra.mxu0 %v405
        %426 = vmatpush.msra.mxu0 %v403
        %427 = vmatpush.msra.mxu0 %v401
        %428 = vmatpush.msra.mxu0 %v399
        %429 = vmatpush.msra.mxu0 %v397
        %430 = vmatpush.msra.mxu0 %v395
        %431 = vmatpush.msra.mxu0 %v393
        %432 = vmatpush.msra.mxu0 %v391
        %433 = vmatpush.msra.mxu0 %v389
        %434 = vmatpush.msra.mxu0 %v387
        %435 = vmatpush.msra.mxu0 %v385
        %436 = vmatpush.msra.mxu0 %v383
        %437 = vmatmul.f32.gmra.mxu0 %v382
        %v438 = vpop.f32.mrf.mxu0
        %v439 = vadd.f32 %v417, %v438
        %440 = vdwg.mxu0
        %441 = vmatpush.msra.mxu0 %v414
        %442 = vmatpush.msra.mxu0 %v412
        %443 = vmatpush.msra.mxu0 %v410
        %444 = vmatpush.msra.mxu0 %v408
        %445 = vmatpush.msra.mxu0 %v406
        %446 = vmatpush.msra.mxu0 %v404
        %447 = vmatpush.msra.mxu0 %v402
        %448 = vmatpush.msra.mxu0 %v400
        %449 = vmatpush.msra.mxu0 %v398
        %450 = vmatpush.msra.mxu0 %v396
        %451 = vmatpush.msra.mxu0 %v394
        %452 = vmatpush.msra.mxu0 %v392
        %453 = vmatpush.msra.mxu0 %v390
        %454 = vmatpush.msra.mxu0 %v388
        %455 = vmatpush.msra.mxu0 %v386
        %456 = vmatpush.msra.mxu0 %v384
        %457 = vmatmul.f32.gmra.mxu0 %v382
        %v458 = vpop.f32.mrf.mxu0
        %v459 = vadd.f32 %v418, %v458
        %460 = vdwg.mxu0
        %v461 = vmax.f32 %v439, 0.0
        %v462 = vmax.f32 %v459, 0.0
        %v463 = vld [vmem:[#allocation2] sm:$0xff]
        %v464 = vld [vmem:[%s331] sm:$0xff]
        %v465 = vld [vmem:[%s331 + $0x8] sm:$0xff]
        %v466 = vld [vmem:[%s331 + $0x10] sm:$0xff]
        %v467 = vld [vmem:[%s331 + $0x18] sm:$0xff]
        %v468 = vld [vmem:[%s331 + $0x20] sm:$0xff]
        %v469 = vld [vmem:[%s331 + $0x28] sm:$0xff]
        %v470 = vld [vmem:[%s331 + $0x30] sm:$0xff]
        %v471 = vld [vmem:[%s331 + $0x38] sm:$0xff]
        %v472 = vld [vmem:[%s331 + $0x40] sm:$0xff]
        %v473 = vld [vmem:[%s331 + $0x48] sm:$0xff]
        %v474 = vld [vmem:[%s331 + $0x50] sm:$0xff]
        %v475 = vld [vmem:[%s331 + $0x58] sm:$0xff]
        %v476 = vld [vmem:[%s331 + $0x60] sm:$0xff]
        %v477 = vld [vmem:[%s331 + $0x68] sm:$0xff]
        %v478 = vld [vmem:[%s331 + $0x70] sm:$0xff]
        %v479 = vld [vmem:[%s331 + $0x78] sm:$0xff]
        %v480 = vld [vmem:[%s331 + $0x80] sm:$0xff]
        %v481 = vld [vmem:[%s331 + $0x88] sm:$0xff]
        %v482 = vld [vmem:[%s331 + $0x90] sm:$0xff]
        %v483 = vld [vmem:[%s331 + $0x98] sm:$0xff]
        %v484 = vld [vmem:[%s331 + $0xa0] sm:$0xff]
        %v485 = vld [vmem:[%s331 + $0xa8] sm:$0xff]
        %v486 = vld [vmem:[%s331 + $0xb0] sm:$0xff]
        %v487 = vld [vmem:[%s331 + $0xb8] sm:$0xff]
        %v488 = vld [vmem:[%s331 + $0xc0] sm:$0xff]
        %v489 = vld [vmem:[%s331 + $0xc8] sm:$0xff]
        %v490 = vld [vmem:[%s331 + $0xd0] sm:$0xff]
        %v491 = vld [vmem:[%s331 + $0xd8] sm:$0xff]
        %v492 = vld [vmem:[%s331 + $0xe0] sm:$0xff]
        %v493 = vld [vmem:[%s331 + $0xe8] sm:$0xff]
        %v494 = vld [vmem:[%s331 + $0xf0] sm:$0xff]
        %v495 = vld [vmem:[%s331 + $0xf8] sm:$0xff]
        %496 = vmatpush.msra.mxu0 %v479
        %497 = vmatpush.msra.mxu0 %v478
        %498 = vmatpush.msra.mxu0 %v477
        %499 = vmatpush.msra.mxu0 %v476
        %500 = vmatpush.msra.mxu0 %v475
        %501 = vmatpush.msra.mxu0 %v474
        %502 = vmatpush.msra.mxu0 %v473
        %503 = vmatpush.msra.mxu0 %v472
        %504 = vmatpush.msra.mxu0 %v471
        %505 = vmatpush.msra.mxu0 %v470
        %506 = vmatpush.msra.mxu0 %v469
        %507 = vmatpush.msra.mxu0 %v468
        %508 = vmatpush.msra.mxu0 %v467
        %509 = vmatpush.msra.mxu0 %v466
        %510 = vmatpush.msra.mxu0 %v465
        %511 = vmatpush.msra.mxu0 %v464
        %512 = vmatmul.f32.gmra.mxu0 %v461
        %v513 = vpop.f32.mrf.mxu0
        %v514 = vadd.f32 0.0, %v513
        %515 = vdwg.mxu0
        %516 = vmatpush.msra.mxu0 %v495
        %517 = vmatpush.msra.mxu0 %v494
        %518 = vmatpush.msra.mxu0 %v493
        %519 = vmatpush.msra.mxu0 %v492
        %520 = vmatpush.msra.mxu0 %v491
        %521 = vmatpush.msra.mxu0 %v490
        %522 = vmatpush.msra.mxu0 %v489
        %523 = vmatpush.msra.mxu0 %v488
        %524 = vmatpush.msra.mxu0 %v487
        %525 = vmatpush.msra.mxu0 %v486
        %526 = vmatpush.msra.mxu0 %v485
        %527 = vmatpush.msra.mxu0 %v484
        %528 = vmatpush.msra.mxu0 %v483
        %529 = vmatpush.msra.mxu0 %v482
        %530 = vmatpush.msra.mxu0 %v481
        %531 = vmatpush.msra.mxu0 %v480
        %532 = vmatmul.f32.gmra.mxu0 %v462
        %v533 = vpop.f32.mrf.mxu0
        %v534 = vadd.f32 %v514, %v533
        %535 = vdwg.mxu0
        %v536 = vadd.f32 %v463, %v534
        %537 = vst [vmem:[#allocation2] sm:$0xff] %v536
        %p538 = scmp.eq.s32.totalorder %s33, 1
        // Predicated region
        $region61: #{tpu_custom_call.1} parent=39 // pred_check
          %p539 = pneg %p538
        $region62: #{tpu_custom_call.1} parent=39 // pred_check_branch
          %541 = sbr.rel (%p539) target = $region64
        $region63: #{tpu_custom_call.1} parent=39 // pred_region
          %v542 = vld [vmem:[#allocation2] sm:$0xff]
          %v543 = vld [vmem:[%s4] sm:$0x1]
          %v545 = vperm.slane %v543, 0
          %v547 = vadd.f32 %v542, %v545
          %548 = vst [vmem:[%s373] sm:$0xff] %v547
        $region64: #{tpu_custom_call.1} parent=39 // pred_fallthru
          _
        %s549 = sand.u32 %s173, 1
        %s550 = scalar_lea.sflag [#allocation5], %s549
        %s551 = sand.u32 %s173, 1
        %s552 = smul.addr %s551, 8
        %s553 = scalar_lea.vmem [#allocation11], %s552
        // Predicated region
        $region65: #{tpu_custom_call.1} parent=39 // pred_check
          %p554 = pneg %p183
        $region66: #{tpu_custom_call.1} parent=39 // pred_check_branch
          %556 = sbr.rel (%p554) target = $region68
        $region67: #{tpu_custom_call.1} parent=39 // pred_region
          %558 = vsyncadd %s550, 0
          %s559 = smul.addr %s32, 8
          %s560 = scalar_lea.hbm %s5, %s559
          %s562 = sshll.u32 %s553, 4
          %s563 = int_to_ptr.vmem [resolvable:$true] %s562
          %s564 = sshll.u32 %s560, 4
          %s565 = int_to_ptr.hbm [resolvable:$true] %s564
          %567 = dma.vmem_to_hbm [thread:$0]  %s563, 128, %s565, %s550
        $region68: #{tpu_custom_call.1} parent=39 // pred_fallthru
          _
      $region40: #{tpu_custom_call.1} parent=5 // pred_fallthru
        _
      %p568 = scmp.le.s32.totalorder 2, %s23
      // Predicated region
      $region69: #{tpu_custom_call.1} parent=5 // pred_check
        %p569 = pneg %p568
      $region70: #{tpu_custom_call.1} parent=5 // pred_check_branch
        %571 = sbr.rel (%p569) target = $region72
      $region71: #{tpu_custom_call.1} parent=5 // pred_region
        %s572 = ssub.s32 %s23, 2
        // Predicated region
        $region73: #{tpu_custom_call.1} parent=71 // pred_check
          %p573 = pneg %p189
        $region74: #{tpu_custom_call.1} parent=71 // pred_check_branch
          %575 = sbr.rel (%p573) target = $region76
        $region75: #{tpu_custom_call.1} parent=71 // pred_region
          %s576 = sand.u32 %s174, 1
          %s577 = scalar_lea.sflag [#allocation5], %s576
          %s578 = sand.u32 %s174, 1
          %s579 = smul.addr %s578, 8
          %s580 = scalar_lea.vmem [#allocation11], %s579
          %582 = dma.done %s577, 128
        $region76: #{tpu_custom_call.1} parent=71 // pred_fallthru
          _
      $region72: #{tpu_custom_call.1} parent=5 // pred_fallthru
        _
    $region6: #{tpu_custom_call.1} parent=1 // loop_footer
      %s27 = sadd.s32 1, %s23
    $region7: #{tpu_custom_call.1} parent=1 // loop_footer_branch
      %22 = sbr.rel target = $region3
    $region8: #{tpu_custom_call.1} parent=1 // loop_exit
      _
    %583 = vsyncpa [#allocation4], 1
    %s584 = scalar_lea.sflag [#allocation4], 1
    %585 = vsyncpa %s584, 1
    %586 = vsyncpa [#allocation7], 1
    %s587 = scalar_lea.sflag [#allocation7], 1
    %588 = vsyncpa %s587, 1
    %589 = vsyncpa [#allocation10], 1
    %s590 = scalar_lea.sflag [#allocation10], 1
    %591 = vsyncpa %s590, 1
    %592 = vsyncpa [#allocation5], 1
    %s593 = scalar_lea.sflag [#allocation5], 1
    %594 = vsyncpa %s593, 1

</llo_original>
